<compile_context>
chip_gen: v7x
topology: tpu7x:2x2x1
jax: 0.10.0
libtpu: 0.0.40
codegen_flags: <defaults>
</compile_context>

<pallas_src>
import functools

import jax
import jax.numpy as jnp
import numpy as np
from jax.experimental import pallas as pl
from jax.experimental.pallas import tpu as pltpu


def _round_up(x, m):
    return (x + m - 1) // m * m


# ----------------------------------------------------------------------------
# Pallas kernel: all fused heads = Conv3x3(+bias) -> ReLU -> Conv1x1(+bias)
# ----------------------------------------------------------------------------
def fused_heads_kernel(x_ref, w1_ref, b1_ref, w2_ref, b2_ref, o_ref, *, tile_n):
    # x_ref : (1, 3*Cin, Lr)     bf16  dy-stacked, zero-padded, row-flattened slab
    # w1_ref: (3, Cmid, 3*Cin)   bf16  dx taps; (dy, channel) folded into K
    # b1_ref: (Cmid, 1)          f32
    # w2_ref: (Cout, Cmid)       bf16  block-diagonal over heads (Cout padded to 8)
    # b2_ref: (Cout, 1)          f32
    # o_ref : (1, Cout, tile_n)  f32   channel-major, lane-dense (tile_n % 128 == 0)
    j = pl.program_id(1)
    base = pl.multiple_of(j * tile_n, tile_n)        # 128-aligned dynamic offset
    # One aligned window load; the dx taps become cheap static lane shifts of a value.
    xw = x_ref[0, :, pl.ds(base, tile_n + 2)]        # (3*Cin, tile_n + 2) bf16
    acc = None
    for dx in range(3):                              # 3 dots with K = 3*Cin (folded taps)
        xs = xw[:, dx:dx + tile_n]                   # (3*Cin, tile_n) bf16
        part = jnp.dot(w1_ref[dx], xs, preferred_element_type=jnp.float32)
        acc = part if acc is None else acc + part
    hid = jnp.maximum(acc + b1_ref[...], 0.0)        # (Cmid, tile_n) f32, bias + ReLU
    out = jnp.dot(w2_ref[...], hid.astype(jnp.bfloat16),
                  preferred_element_type=jnp.float32) + b2_ref[...]
    o_ref[0] = out.astype(o_ref.dtype)               # full-lane (Cout, tile_n) store


def run_fused_heads(x_nchw, w1k, b1, w2t, b2, *, tile_n=128):
    """Apply all fused heads to an NCHW feature map. Returns (B, Cout_pad, H, W) f32.

    tile_n must be a multiple of 128. At production feature-map sizes use 512-1024:
    keep (2x bf16 slab block) + (Cmid_tot*tile_n*4B hidden) + (2x f32 out tile) under
    ~20-24 MiB for v7x's 64 MiB VMEM; v5e/v6e (128 MiB) can roughly double tile_n.
    """
    assert tile_n % 128 == 0
    B, C, H, W = x_nchw.shape
    Wp = W + 2
    n_out = H * Wp
    n_out_pad = _round_up(n_out, tile_n)     # lane-dense / exactly-tileable pixel extent
    Lr = n_out_pad + 128                     # room for the last tile's +2 window (vreg-covered)
    # Zero-pad: 1 top / 1 left / 1 right / enough bottom rows so the dy in {0,1,2}
    # shifted slabs all have Lr valid (zero-filled) columns.
    rows = -(-(Lr + 2 * Wp) // Wp)
    pad_bottom = rows - (H + 1)
    assert pad_bottom >= 0
    xpad = jnp.pad(x_nchw, ((0, 0), (0, 0), (1, pad_bottom), (1, 1)))
    x_flat = xpad.reshape(B, C, rows * Wp).astype(jnp.bfloat16)
    # dy-shifted slab: slab[:, dy*C + c, l] = x_flat[:, c, l + dy*Wp]. Folds the vertical
    # taps into the contraction dim; under jit this fuses with the pad/cast above.
    slab = jnp.concatenate(
        [x_flat[:, :, dy * Wp: dy * Wp + Lr] for dy in range(3)], axis=1)  # (B, 3*C, Lr)

    cout, cmid = w2t.shape
    c3 = slab.shape[1]
    n_tiles = n_out_pad // tile_n
    flops = 2 * B * n_out_pad * (3 * c3 * cmid + cmid * cout)
    bytes_accessed = (slab.size * 2 + w1k.size * 2 + w2t.size * 2
                      + b1.size * 4 + b2.size * 4 + B * cout * n_out_pad * 4)

    out = pl.pallas_call(
        functools.partial(fused_heads_kernel, tile_n=tile_n),
        out_shape=jax.ShapeDtypeStruct((B, cout, n_out_pad), jnp.float32),
        grid=(B, n_tiles),
        in_specs=[
            # slab block index is constant across the tile axis -> one DMA per batch elem
            pl.BlockSpec((1, c3, Lr), lambda b, j: (b, 0, 0)),
            pl.BlockSpec((3, cmid, c3), lambda b, j: (0, 0, 0)),
            pl.BlockSpec((cmid, 1), lambda b, j: (0, 0)),
            pl.BlockSpec((cout, cmid), lambda b, j: (0, 0)),
            pl.BlockSpec((cout, 1), lambda b, j: (0, 0)),
        ],
        out_specs=pl.BlockSpec((1, cout, tile_n), lambda b, j: (b, 0, j)),
        compiler_params=pltpu.CompilerParams(
            dimension_semantics=("parallel", "parallel"),
            vmem_limit_bytes=32 * 1024 * 1024),
        cost_estimate=pl.CostEstimate(flops=int(flops), transcendentals=0,
                                      bytes_accessed=int(bytes_accessed)),
    )(slab, w1k, b1, w2t, b2)

    # (B, Cout, n_out_pad) -> NCHW; drop pad tail + the 2 wrap-around columns per row.
    return out[:, :, :n_out].reshape(B, cout, H, Wp)[:, :, :, :W]


# ----------------------------------------------------------------------------
# Jitted per-stack paths (prep + kernel + un-pad fuse into one dispatch chain)
# ----------------------------------------------------------------------------
@functools.partial(jax.jit, static_argnames=("norm_ch", "normalize", "tile_n"))
def _pc_stack_forward(feat, pc_src, w1k, b1, w2t, b2, max_pc_dist, *,
                      norm_ch, normalize, tile_n):
    pc_hm = jnp.nan_to_num(pc_src)       # sanitize: 0 * NaN would poison primary heads
    if normalize:
        pc_hm = pc_hm.at[:, norm_ch].divide(max_pc_dist)
    fused = jnp.concatenate([feat, pc_hm], axis=1)   # fuses into slab prep under jit
    slab = run_fused_heads(fused, w1k, b1, w2t, b2, tile_n=tile_n)
    return slab, pc_hm


@functools.partial(jax.jit, static_argnames=("n_pc", "tile_n"))
def _plain_stack_forward(feat, w1k, b1, w2t, b2, *, n_pc, tile_n):
    B, _, H, W = feat.shape
    if n_pc:
        feat = jnp.concatenate([feat, jnp.zeros((B, n_pc, H, W), feat.dtype)], axis=1)
    return run_fused_heads(feat, w1k, b1, w2t, b2, tile_n=tile_n)


# ----------------------------------------------------------------------------
# Options / model (mirrors BaseModel.__init__ / forward semantics)
# ----------------------------------------------------------------------------
class Opt:
    head_kernel = 3
    secondary_heads = ("dep_sec",)
    pc_feat_lvl = ("pc_dep",)
    pc_feat_channels = {"pc_dep": 0}
    pointcloud = True
    disable_frustum = True
    normalize_depth = True
    max_pc_dist = 60.0
    prior_bias = -4.6
    quantize_heads = "none"   # TODO(synk): posit quantization (astype/tobin/frombin) not translatable
    qdevice = "cpu"


class BaseModelPallas:
    def __init__(self, heads, head_convs, num_stacks, last_channel, opt, key, tile_n=128):
        self.opt = opt
        self.heads = heads
        self.num_stacks = num_stacks
        self.secondary_heads = tuple(opt.secondary_heads)
        self.n_pc = len(opt.pc_feat_lvl)
        self.tile_n = tile_n
        cin_primary = last_channel
        cin_total = last_channel + self.n_pc
        self.cin_total = cin_total

        # --- per-head parameters (f32, kept for the reference check) -------------
        self.params = {}
        cmid_tot = 0
        cout_tot = 0
        for head, classes in heads.items():
            # TODO(synk): only single-hidden-layer heads (len(head_conv)==1) implemented.
            assert len(head_convs[head]) == 1
            cin_h = cin_total if head in self.secondary_heads else cin_primary
            cmid = head_convs[head][0]
            key, k1, k2, k3 = jax.random.split(key, 4)
            w1 = jax.random.normal(k1, (3, 3, cin_h, cmid), jnp.float32) * 0.05   # HWIO
            w2 = jax.random.normal(k2, (cmid, classes), jnp.float32) * 0.05       # 1x1 conv
            if "hm" in head:
                # fc[-1].bias filled with prior_bias; first conv bias keeps its init
                b1 = jax.random.normal(k3, (cmid,), jnp.float32) * 0.01
                b2 = jnp.full((classes,), opt.prior_bias, jnp.float32)
            else:
                # fill_fc_weights: all conv biases -> 0
                b1 = jnp.zeros((cmid,), jnp.float32)
                b2 = jnp.zeros((classes,), jnp.float32)
            self.params[head] = dict(w1_hwio=w1, b1=b1, w2=w2, b2=b2,
                                     cin=cin_h, cmid=cmid, classes=classes)
            cmid_tot += cmid
            cout_tot += classes

        self.cmid_tot = cmid_tot
        self.cout_tot = cout_tot
        self.cout_pad = _round_up(cout_tot, 8)

        # --- fuse all heads into one weight set ----------------------------------
        # zero rows on the pc channel(s) for primary heads; block-diagonal 1x1.
        w1_full = np.zeros((3, 3, cin_total, cmid_tot), np.float32)
        w2_full = np.zeros((cmid_tot, self.cout_pad), np.float32)
        b1_full = np.zeros((cmid_tot,), np.float32)
        b2_full = np.zeros((self.cout_pad,), np.float32)
        self.head_slices = {}
        m0, c0 = 0, 0
        for head in heads:
            p = self.params[head]
            cmid, classes, cin_h = p["cmid"], p["classes"], p["cin"]
            w1_full[:, :, :cin_h, m0:m0 + cmid] = np.asarray(p["w1_hwio"])
            b1_full[m0:m0 + cmid] = np.asarray(p["b1"])
            w2_full[m0:m0 + cmid, c0:c0 + classes] = np.asarray(p["w2"])
            b2_full[c0:c0 + classes] = np.asarray(p["b2"])
            self.head_slices[head] = (c0, classes)
            m0 += cmid
            c0 += classes

        # Kernel-ready layouts. w1k folds (dy, cin) into the contraction dim:
        #   w1k[dx, m, dy*Cin_total + c] = w1_full[dy, dx, c, m]
        self.w1k = jnp.asarray(
            w1_full.transpose(1, 3, 0, 2).reshape(3, cmid_tot, 3 * cin_total),
            jnp.bfloat16)
        self.w2t = jnp.asarray(w2_full.T, jnp.bfloat16)
        self.b1 = jnp.asarray(b1_full.reshape(cmid_tot, 1))
        self.b2 = jnp.asarray(b2_full.reshape(self.cout_pad, 1))

    def img2feats(self, x):
        # TODO(synk): backbone is abstract (raises NotImplementedError in the reference);
        # we treat the input as the already-extracted feature map for each stack.
        return [x for _ in range(self.num_stacks)]

    def forward(self, x, pc_hm=None, pc_dep=None, calib=None, training=False):
        feats = self.img2feats(x)
        out = []
        for s in range(self.num_stacks):
            z = {}
            feat = feats[s]
            if self.opt.pointcloud:
                if not training:
                    if self.opt.disable_frustum:
                        pc_src, normalize = pc_dep, self.opt.normalize_depth
                    else:
                        # TODO(synk): generate_pc_hm (frustum association) is an external
                        # data-dependent routine with no clean Pallas equivalent.
                        raise NotImplementedError
                else:
                    pc_src, normalize = pc_hm, False
                slab, pc_hm_used = _pc_stack_forward(
                    feat, pc_src, self.w1k, self.b1, self.w2t, self.b2,
                    self.opt.max_pc_dist,
                    norm_ch=self.opt.pc_feat_channels["pc_dep"],
                    normalize=normalize, tile_n=self.tile_n)
            else:
                slab = _plain_stack_forward(feat, self.w1k, self.b1, self.w2t, self.b2,
                                            n_pc=self.n_pc, tile_n=self.tile_n)
                pc_hm_used = None

            for head in self.heads:
                if head in self.secondary_heads:
                    continue
                c0, nc = self.head_slices[head]
                z[head] = slab[:, c0:c0 + nc]
            if self.opt.pointcloud:
                ind = self.opt.pc_feat_channels["pc_dep"]
                z["pc_hm"] = pc_hm_used[:, ind:ind + 1, :, :]
                for head in self.secondary_heads:
                    c0, nc = self.head_slices[head]
                    z[head] = slab[:, c0:c0 + nc]
            out.append(z)
        return out


# ----------------------------------------------------------------------------
# Plain-JAX reference head (lax.conv) at matching precision (bf16 MXU, f32 acc)
# ----------------------------------------------------------------------------
def ref_head(feat_nchw, p):
    bf = jnp.bfloat16
    y = jax.lax.conv_general_dilated(
        feat_nchw.astype(bf), p["w1_hwio"].astype(bf), (1, 1), "SAME",
        dimension_numbers=("NCHW", "HWIO", "NCHW"),
        preferred_element_type=jnp.float32)
    y = y + p["b1"].reshape(1, -1, 1, 1)
    y = jnp.maximum(y, 0.0)
    w2 = p["w2"].reshape(1, 1, p["cmid"], p["classes"]).astype(bf)
    y = jax.lax.conv_general_dilated(
        y.astype(bf), w2, (1, 1), "SAME",
        dimension_numbers=("NCHW", "HWIO", "NCHW"),
        preferred_element_type=jnp.float32)
    return y + p["b2"].reshape(1, -1, 1, 1)


if __name__ == "__main__":
    opt = Opt()
    heads = {"hm": 3, "reg": 2, "dep_sec": 1}
    head_convs = {"hm": [32], "reg": [32], "dep_sec": [32]}
    B, C, H, W = 2, 32, 16, 16

    key = jax.random.PRNGKey(0)
    k_params, k_x, k_pc = jax.random.split(key, 3)

    model = BaseModelPallas(heads, head_convs, num_stacks=1,
                            last_channel=C, opt=opt, key=k_params, tile_n=128)

    x = jax.random.normal(k_x, (B, C, H, W), jnp.float32)
    pc_dep = jax.random.uniform(k_pc, (B, len(opt.pc_feat_lvl), H, W),
                                jnp.float32) * opt.max_pc_dist

    out = model.forward(x, pc_dep=pc_dep, training=False)
    jax.block_until_ready(out)

    # Correctness check against a plain-JAX conv reference at matching precision.
    z = out[0]
    pc_hm_ref = pc_dep.at[:, 0].divide(opt.max_pc_dist)
    sec_feats_ref = jnp.concatenate([x, pc_hm_ref], axis=1)
    ref_inputs = {"hm": x, "reg": x, "dep_sec": sec_feats_ref}
    for head in heads:
        ref = ref_head(ref_inputs[head], model.params[head])
        np.testing.assert_allclose(np.asarray(z[head]), np.asarray(ref),
                                   rtol=2e-3, atol=2e-3)
    np.testing.assert_allclose(np.asarray(z["pc_hm"]),
                               np.asarray(pc_hm_ref[:, 0:1]), rtol=1e-6, atol=1e-6)

    print("KERNEL_OK")
</pallas_src>

<mosaic_0001>
module attributes {stable_mosaic.version = 11 : i64} {
  func.func @fused_heads_kernel(%arg0: i32, %arg1: i32, %arg2: memref<1x99x512xbf16, #tpu.memory_space<vmem>>, %arg3: memref<3x96x99xbf16, #tpu.memory_space<vmem>>, %arg4: memref<96x1xf32, #tpu.memory_space<vmem>>, %arg5: memref<8x96xbf16, #tpu.memory_space<vmem>>, %arg6: memref<8x1xf32, #tpu.memory_space<vmem>>, %arg7: memref<1x8x128xf32, #tpu.memory_space<vmem>>) attributes {dimension_semantics = [#tpu.dimension_semantics<parallel>, #tpu.dimension_semantics<parallel>], iteration_bounds = array<i64: 2, 3>, scalar_prefetch = 0 : i64, scratch_operands = 0 : i64, tpu.core_type = #tpu.core_type<tc>, window_params = [{transform_indices = @transform_0, window_bounds = array<i64: 1, 99, 512>}, {pipeline_mode = #tpu.pipeline_mode<synchronous>, transform_indices = @transform_1, window_bounds = array<i64: 3, 96, 99>}, {pipeline_mode = #tpu.pipeline_mode<synchronous>, transform_indices = @transform_2, window_bounds = array<i64: 96, 1>}, {pipeline_mode = #tpu.pipeline_mode<synchronous>, transform_indices = @transform_3, window_bounds = array<i64: 8, 96>}, {pipeline_mode = #tpu.pipeline_mode<synchronous>, transform_indices = @transform_4, window_bounds = array<i64: 8, 1>}, {transform_indices = @transform_5, window_bounds = array<i64: 1, 8, 128>}]} {
    %c128_i32 = arith.constant 128 : i32
    %0 = arith.muli %arg1, %c128_i32 : i32
    %1 = tpu.assume_multiple %0, 128 : i32
    %c0 = arith.constant 0 : index
    %c0_0 = arith.constant 0 : index
    %2 = arith.index_cast %1 : i32 to index
    %3 = vector.load %arg2[%c0, %c0_0, %2] : memref<1x99x512xbf16, #tpu.memory_space<vmem>>, vector<1x99x130xbf16>
    %4 = vector.shape_cast %3 : vector<1x99x130xbf16> to vector<99x130xbf16>
    %5 = vector.extract_strided_slice %4 {offsets = [0, 0], sizes = [99, 128], strides = [1, 1]} : vector<99x130xbf16> to vector<99x128xbf16>
    %c0_1 = arith.constant 0 : index
    %c0_2 = arith.constant 0 : index
    %c0_3 = arith.constant 0 : index
    %6 = vector.load %arg3[%c0_1, %c0_2, %c0_3] : memref<3x96x99xbf16, #tpu.memory_space<vmem>>, vector<1x96x99xbf16>
    %7 = vector.shape_cast %6 : vector<1x96x99xbf16> to vector<96x99xbf16>
    %cst = arith.constant dense<0.000000e+00> : vector<96x128xf32>
    %8 = tpu.matmul %7, %5, %cst {dimension_numbers = #tpu.dot_dimension_numbers<[1], [0], [0], [1], [0, 0, 1, 1], [], []>} : vector<96x99xbf16>, vector<99x128xbf16>, vector<96x128xf32> -> vector<96x128xf32>
    %9 = vector.extract_strided_slice %4 {offsets = [0, 1], sizes = [99, 128], strides = [1, 1]} : vector<99x130xbf16> to vector<99x128xbf16>
    %c1 = arith.constant 1 : index
    %c0_4 = arith.constant 0 : index
    %c0_5 = arith.constant 0 : index
    %10 = vector.load %arg3[%c1, %c0_4, %c0_5] : memref<3x96x99xbf16, #tpu.memory_space<vmem>>, vector<1x96x99xbf16>
    %11 = vector.shape_cast %10 : vector<1x96x99xbf16> to vector<96x99xbf16>
    %cst_6 = arith.constant dense<0.000000e+00> : vector<96x128xf32>
    %12 = tpu.matmul %11, %9, %cst_6 {dimension_numbers = #tpu.dot_dimension_numbers<[1], [0], [0], [1], [0, 0, 1, 1], [], []>} : vector<96x99xbf16>, vector<99x128xbf16>, vector<96x128xf32> -> vector<96x128xf32>
    %13 = arith.addf %8, %12 : vector<96x128xf32>
    %14 = vector.extract_strided_slice %4 {offsets = [0, 2], sizes = [99, 128], strides = [1, 1]} : vector<99x130xbf16> to vector<99x128xbf16>
    %c2 = arith.constant 2 : index
    %c0_7 = arith.constant 0 : index
    %c0_8 = arith.constant 0 : index
    %15 = vector.load %arg3[%c2, %c0_7, %c0_8] : memref<3x96x99xbf16, #tpu.memory_space<vmem>>, vector<1x96x99xbf16>
    %16 = vector.shape_cast %15 : vector<1x96x99xbf16> to vector<96x99xbf16>
    %cst_9 = arith.constant dense<0.000000e+00> : vector<96x128xf32>
    %17 = tpu.matmul %16, %14, %cst_9 {dimension_numbers = #tpu.dot_dimension_numbers<[1], [0], [0], [1], [0, 0, 1, 1], [], []>} : vector<96x99xbf16>, vector<99x128xbf16>, vector<96x128xf32> -> vector<96x128xf32>
    %18 = arith.addf %13, %17 : vector<96x128xf32>
    %c0_10 = arith.constant 0 : index
    %c0_11 = arith.constant 0 : index
    %19 = vector.load %arg4[%c0_10, %c0_11] : memref<96x1xf32, #tpu.memory_space<vmem>>, vector<96x1xf32>
    %20 = vector.broadcast %19 : vector<96x1xf32> to vector<96x128xf32>
    %21 = arith.addf %18, %20 : vector<96x128xf32>
    %cst_12 = arith.constant 0.000000e+00 : f32
    %22 = vector.broadcast %cst_12 : f32 to vector<96x128xf32>
    %23 = arith.maximumf %21, %22 : vector<96x128xf32>
    %c0_13 = arith.constant 0 : index
    %c0_14 = arith.constant 0 : index
    %24 = vector.load %arg5[%c0_13, %c0_14] : memref<8x96xbf16, #tpu.memory_space<vmem>>, vector<8x96xbf16>
    %25 = arith.truncf %23 : vector<96x128xf32> to vector<96x128xbf16>
    %cst_15 = arith.constant dense<0.000000e+00> : vector<8x128xf32>
    %26 = tpu.matmul %24, %25, %cst_15 {dimension_numbers = #tpu.dot_dimension_numbers<[1], [0], [0], [1], [0, 0, 1, 1], [], []>} : vector<8x96xbf16>, vector<96x128xbf16>, vector<8x128xf32> -> vector<8x128xf32>
    %c0_16 = arith.constant 0 : index
    %c0_17 = arith.constant 0 : index
    %27 = vector.load %arg6[%c0_16, %c0_17] : memref<8x1xf32, #tpu.memory_space<vmem>>, vector<8x1xf32>
    %28 = vector.broadcast %27 : vector<8x1xf32> to vector<8x128xf32>
    %29 = arith.addf %26, %28 : vector<8x128xf32>
    %c0_18 = arith.constant 0 : index
    %c0_19 = arith.constant 0 : index
    %c0_20 = arith.constant 0 : index
    %30 = vector.load %arg7[%c0_18, %c0_19, %c0_20] : memref<1x8x128xf32, #tpu.memory_space<vmem>>, vector<1x8x128xf32>
    %31 = vector.shape_cast %30 : vector<1x8x128xf32> to vector<8x128xf32>
    %32 = vector.shape_cast %29 : vector<8x128xf32> to vector<1x8x128xf32>
    tpu.vector_store %arg7[%c0_18, %c0_19, %c0_20], %32 {strides = array<i32>} : memref<1x8x128xf32, #tpu.memory_space<vmem>>, vector<1x8x128xf32>,
    return
  }
  func.func @transform_0(%arg0: i32, %arg1: i32) -> (i32, i32, i32) {
    %c0_i32 = arith.constant 0 : i32
    %c0_i32_0 = arith.constant 0 : i32
    %c0_i32_1 = arith.constant 0 : i32
    return %arg0, %c0_i32, %c0_i32_0 : i32, i32, i32
  }
  func.func @transform_1(%arg0: i32, %arg1: i32) -> (i32, i32, i32) {
    %c0_i32 = arith.constant 0 : i32
    %c0_i32_0 = arith.constant 0 : i32
    %c0_i32_1 = arith.constant 0 : i32
    %c0_i32_2 = arith.constant 0 : i32
    return %c0_i32, %c0_i32_0, %c0_i32_1 : i32, i32, i32
  }
  func.func @transform_2(%arg0: i32, %arg1: i32) -> (i32, i32) {
    %c0_i32 = arith.constant 0 : i32
    %c0_i32_0 = arith.constant 0 : i32
    %c0_i32_1 = arith.constant 0 : i32
    return %c0_i32, %c0_i32_0 : i32, i32
  }
  func.func @transform_3(%arg0: i32, %arg1: i32) -> (i32, i32) {
    %c0_i32 = arith.constant 0 : i32
    %c0_i32_0 = arith.constant 0 : i32
    %c0_i32_1 = arith.constant 0 : i32
    return %c0_i32, %c0_i32_0 : i32, i32
  }
  func.func @transform_4(%arg0: i32, %arg1: i32) -> (i32, i32) {
    %c0_i32 = arith.constant 0 : i32
    %c0_i32_0 = arith.constant 0 : i32
    %c0_i32_1 = arith.constant 0 : i32
    return %c0_i32, %c0_i32_0 : i32, i32
  }
  func.func @transform_5(%arg0: i32, %arg1: i32) -> (i32, i32, i32) {
    %c0_i32 = arith.constant 0 : i32
    %c0_i32_0 = arith.constant 0 : i32
    return %arg0, %c0_i32, %arg1 : i32, i32, i32
  }
}

</mosaic_0001>

<llo_original>
// kernel: _pc_stack_forward.1
$region0: #{_pc_stack_forward.1}
  #allocation0 [shape = 'u32[]', space=smem, size = 0x4, offset = 0x4, fixed_abs, tag = 'smem constant byte address 0x4 - core index']
  #allocation1 [shape = 'u32[144,128]{1,0:T(1,128)}', space=vmem, size = 0x12000, scoped, tag = 'internal scratch']
  %s0 = inlined_call_operand.vmem [shape: bf16[2,99,512], index: 0, kind: input, shape index: {}]
  %s1 = inlined_call_operand.vmem [shape: bf16[3,96,99], index: 1, kind: input, shape index: {}]
  %s2 = inlined_call_operand.vmem [shape: f32[96,1], index: 2, kind: input, shape index: {}]
  %s3 = inlined_call_operand.vmem [shape: bf16[8,96], index: 3, kind: input, shape index: {}]
  %s4 = inlined_call_operand.vmem [shape: f32[8,1], index: 4, kind: input, shape index: {}]
  %s5 = inlined_call_operand.vmem [shape: f32[2,8,384], index: 5, kind: output, shape index: {}]
  %s6 = sld [smem:[#allocation0]]
  $region53: #{_pc_stack_forward.1} parent=0
    _
  %s8 = ssub.s32 1, %s6
  %s9 = scalar_select 0, %s8, %s6
  loop: start=0, step=1, limit=8
  $region2: #{_pc_stack_forward.1} parent=0 // loop_pre_header
    _
  $region3: #{_pc_stack_forward.1} parent=0 // loop_header
    %s11 = sphi 0, %s15
    %p12 = scmp.ge.s32.totalorder %s11, 8
    %s18 = sphi 0, %s30
    %s19 = sphi 0, %s26
    %s20 = sphi 0, %s18
    %s21 = sphi 0, %s19
    %s22 = sphi 0, %s20
    %s23 = sphi 0, %s21
    %s33 = sphi 0, %s35
    %s36 = sphi 0, %s33
    %s37 = sphi 0, %s36
    %s53 = sphi 0, %s37
    %s57 = sphi 0, %s57
    %s59 = sphi 0, %s57
    %s60 = sphi 0, %s59
    %s74 = sphi 0, %s60
    %s78 = sphi 0, %s78
    %s80 = sphi 0, %s78
    %s81 = sphi 0, %s80
    %s95 = sphi 0, %s81
    %s99 = sphi 0, %s99
    %s101 = sphi 0, %s99
    %s102 = sphi 0, %s101
    %s116 = sphi 0, %s102
    %s120 = sphi 0, %s120
    %s122 = sphi 0, %s120
    %s123 = sphi 0, %s122
    %s137 = sphi 0, %s123
    %s145 = sphi 0, %s147
    %s148 = sphi 0, %s145
    %s149 = sphi 0, %s148
    %s165 = sphi 0, %s149
  $region4: #{_pc_stack_forward.1} parent=0 // loop_header_branch
    %14 = sbr.rel (%p12) target = $region8
  $region5: #{_pc_stack_forward.1} parent=0 // loop_body
    %s16 = ssub.s32 %s11, 1
    %s17 = ssub.s32 %s11, 2
    %s24 = sadd.s32 1, %s19
    %p25 = scmp.ge.s32.totalorder %s24, 3
    %s26 = scalar_select %p25, 0, %s24
    %s27 = sadd.s32 1, %s18
    %s28 = scalar_select %p25, %s27, %s18
    %p29 = scmp.ge.s32.totalorder %s28, 2
    %s30 = scalar_select %p29, 0, %s28
    %s31 = ssub.s32 %s18, %s30
    %p32 = scmp.eq.s32.totalorder %s31, 0
    %s34 = sadd.s32 %s33, 1
    %s35 = scalar_select %p32, %s33, %s34
    %p38 = pneg %p32
    %p39 = scmp.eq.s32.totalorder %s11, 5
    %p40 = por %p38, %p39
    %p41 = scmp.ne.s32.totalorder %s33, %s36
    %p42 = scmp.eq.s32.totalorder %s11, 0
    %p43 = por %p41, %p42
    %p44 = scmp.ne.s32.totalorder %s33, %s36
    %p45 = scmp.eq.s32.totalorder %s16, 5
    %p46 = por %p44, %p45
    %p47 = scmp.ne.s32.totalorder %s36, %s37
    %p48 = scmp.eq.s32.totalorder %s16, 0
    %p49 = por %p47, %p48
    %p50 = scmp.ne.s32.totalorder %s36, %s37
    %p51 = scmp.eq.s32.totalorder %s17, 5
    %p52 = por %p50, %p51
    %p54 = scmp.ne.s32.totalorder %s37, %s53
    %p55 = scmp.eq.s32.totalorder %s17, 0
    %p56 = por %p54, %p55
    %s58 = sadd.s32 %s57, 1
    %p61 = scmp.eq.s32.totalorder %s11, 5
    %p62 = scmp.ne.s32.totalorder %s57, %s59
    %p63 = scmp.eq.s32.totalorder %s11, 0
    %p64 = por %p62, %p63
    %p65 = scmp.ne.s32.totalorder %s57, %s59
    %p66 = scmp.eq.s32.totalorder %s16, 5
    %p67 = por %p65, %p66
    %p68 = scmp.ne.s32.totalorder %s59, %s60
    %p69 = scmp.eq.s32.totalorder %s16, 0
    %p70 = por %p68, %p69
    %p71 = scmp.ne.s32.totalorder %s59, %s60
    %p72 = scmp.eq.s32.totalorder %s17, 5
    %p73 = por %p71, %p72
    %p75 = scmp.ne.s32.totalorder %s60, %s74
    %p76 = scmp.eq.s32.totalorder %s17, 0
    %p77 = por %p75, %p76
    %s79 = sadd.s32 %s78, 1
    %p82 = scmp.eq.s32.totalorder %s11, 5
    %p83 = scmp.ne.s32.totalorder %s78, %s80
    %p84 = scmp.eq.s32.totalorder %s11, 0
    %p85 = por %p83, %p84
    %p86 = scmp.ne.s32.totalorder %s78, %s80
    %p87 = scmp.eq.s32.totalorder %s16, 5
    %p88 = por %p86, %p87
    %p89 = scmp.ne.s32.totalorder %s80, %s81
    %p90 = scmp.eq.s32.totalorder %s16, 0
    %p91 = por %p89, %p90
    %p92 = scmp.ne.s32.totalorder %s80, %s81
    %p93 = scmp.eq.s32.totalorder %s17, 5
    %p94 = por %p92, %p93
    %p96 = scmp.ne.s32.totalorder %s81, %s95
    %p97 = scmp.eq.s32.totalorder %s17, 0
    %p98 = por %p96, %p97
    %s100 = sadd.s32 %s99, 1
    %p103 = scmp.eq.s32.totalorder %s11, 5
    %p104 = scmp.ne.s32.totalorder %s99, %s101
    %p105 = scmp.eq.s32.totalorder %s11, 0
    %p106 = por %p104, %p105
    %p107 = scmp.ne.s32.totalorder %s99, %s101
    %p108 = scmp.eq.s32.totalorder %s16, 5
    %p109 = por %p107, %p108
    %p110 = scmp.ne.s32.totalorder %s101, %s102
    %p111 = scmp.eq.s32.totalorder %s16, 0
    %p112 = por %p110, %p111
    %p113 = scmp.ne.s32.totalorder %s101, %s102
    %p114 = scmp.eq.s32.totalorder %s17, 5
    %p115 = por %p113, %p114
    %p117 = scmp.ne.s32.totalorder %s102, %s116
    %p118 = scmp.eq.s32.totalorder %s17, 0
    %p119 = por %p117, %p118
    %s121 = sadd.s32 %s120, 1
    %p124 = scmp.eq.s32.totalorder %s11, 5
    %p125 = scmp.ne.s32.totalorder %s120, %s122
    %p126 = scmp.eq.s32.totalorder %s11, 0
    %p127 = por %p125, %p126
    %p128 = scmp.ne.s32.totalorder %s120, %s122
    %p129 = scmp.eq.s32.totalorder %s16, 5
    %p130 = por %p128, %p129
    %p131 = scmp.ne.s32.totalorder %s122, %s123
    %p132 = scmp.eq.s32.totalorder %s16, 0
    %p133 = por %p131, %p132
    %p134 = scmp.ne.s32.totalorder %s122, %s123
    %p135 = scmp.eq.s32.totalorder %s17, 5
    %p136 = por %p134, %p135
    %p138 = scmp.ne.s32.totalorder %s123, %s137
    %p139 = scmp.eq.s32.totalorder %s17, 0
    %p140 = por %p138, %p139
    %s141 = ssub.s32 %s18, %s30
    %s142 = ssub.s32 %s19, %s26
    %s143 = sor.u32 %s141, %s142
    %p144 = scmp.eq.s32.totalorder %s143, 0
    %s146 = sadd.s32 %s145, 1
    %s147 = scalar_select %p144, %s145, %s146
    %p150 = pneg %p144
    %p151 = scmp.eq.s32.totalorder %s11, 5
    %p152 = por %p150, %p151
    %p153 = scmp.ne.s32.totalorder %s145, %s148
    %p154 = scmp.eq.s32.totalorder %s11, 0
    %p155 = por %p153, %p154
    %p156 = scmp.ne.s32.totalorder %s145, %s148
    %p157 = scmp.eq.s32.totalorder %s16, 5
    %p158 = por %p156, %p157
    %p159 = scmp.ne.s32.totalorder %s148, %s149
    %p160 = scmp.eq.s32.totalorder %s16, 0
    %p161 = por %p159, %p160
    %p162 = scmp.ne.s32.totalorder %s148, %s149
    %p163 = scmp.eq.s32.totalorder %s17, 5
    %p164 = por %p162, %p163
    %p166 = scmp.ne.s32.totalorder %s149, %s165
    %p167 = scmp.eq.s32.totalorder %s17, 0
    %p168 = por %p166, %p167
    %p169 = scmp.le.s32.totalorder 1, %s11
    %p170 = scmp.lt.s32.totalorder %s11, 7
    %p171 = pnand %p169, %p170
    %p172 = pneg %p171
    // Predicated region
    $region9: #{_pc_stack_forward.1} parent=5 // pred_check
      _
    $region10: #{_pc_stack_forward.1} parent=5 // pred_check_branch
      %174 = sbr.rel (%p171) target = $region12
    $region11: #{_pc_stack_forward.1} parent=5 // pred_region
      %s175 = ssub.s32 %s11, 1
      // Predicated region
      $region13: #{_pc_stack_forward.1} parent=11 // pred_check
        %p176 = pneg %p70
      $region14: #{_pc_stack_forward.1} parent=11 // pred_check_branch
        %178 = sbr.rel (%p176) target = $region16
      $region15: #{_pc_stack_forward.1} parent=11 // pred_region
        _
      $region16: #{_pc_stack_forward.1} parent=11 // pred_fallthru
        _
      // Predicated region
      $region17: #{_pc_stack_forward.1} parent=11 // pred_check
        %p179 = pneg %p91
      $region18: #{_pc_stack_forward.1} parent=11 // pred_check_branch
        %181 = sbr.rel (%p179) target = $region20
      $region19: #{_pc_stack_forward.1} parent=11 // pred_region
        _
      $region20: #{_pc_stack_forward.1} parent=11 // pred_fallthru
        _
      // Predicated region
      $region21: #{_pc_stack_forward.1} parent=11 // pred_check
        %p182 = pneg %p112
      $region22: #{_pc_stack_forward.1} parent=11 // pred_check_branch
        %184 = sbr.rel (%p182) target = $region24
      $region23: #{_pc_stack_forward.1} parent=11 // pred_region
        _
      $region24: #{_pc_stack_forward.1} parent=11 // pred_fallthru
        _
      // Predicated region
      $region25: #{_pc_stack_forward.1} parent=11 // pred_check
        %p185 = pneg %p133
      $region26: #{_pc_stack_forward.1} parent=11 // pred_check_branch
        %187 = sbr.rel (%p185) target = $region28
      $region27: #{_pc_stack_forward.1} parent=11 // pred_region
        _
      $region28: #{_pc_stack_forward.1} parent=11 // pred_fallthru
        _
    $region12: #{_pc_stack_forward.1} parent=5 // pred_fallthru
      _
    %p188 = scmp.lt.s32.totalorder %s11, 6
    // Predicated region
    $region29: #{_pc_stack_forward.1} parent=5 // pred_check
      %p189 = pneg %p188
    $region30: #{_pc_stack_forward.1} parent=5 // pred_check_branch
      %191 = sbr.rel (%p189) target = $region32
    $region31: #{_pc_stack_forward.1} parent=5 // pred_region
      // Predicated region
      $region33: #{_pc_stack_forward.1} parent=31 // pred_check
        %p192 = pneg %p43
      $region34: #{_pc_stack_forward.1} parent=31 // pred_check_branch
        %194 = sbr.rel (%p192) target = $region36
      $region35: #{_pc_stack_forward.1} parent=31 // pred_region
        %p195 = scmp.lt.s32.totalorder %s18, 1
        %s196 = scalar_select %p195, %s18, 1
        %s197 = smul.addr %s196, 52
        %s198 = smul.addr %s197, 4
        %s199 = scalar_lea.vmem %s0, %s198
      $region36: #{_pc_stack_forward.1} parent=31 // pred_fallthru
        _
    $region32: #{_pc_stack_forward.1} parent=5 // pred_fallthru
      _
    %p200 = scmp.le.s32.totalorder 1, %s11
    %p201 = scmp.lt.s32.totalorder %s11, 7
    %p202 = pnand %p200, %p201
    %p203 = pneg %p202
    // Predicated region
    $region37: #{_pc_stack_forward.1} parent=5 // pred_check
      _
    $region38: #{_pc_stack_forward.1} parent=5 // pred_check_branch
      %205 = sbr.rel (%p202) target = $region40
    $region39: #{_pc_stack_forward.1} parent=5 // pred_region
      %s206 = ssub.s32 %s11, 1
      %p207 = scmp.lt.s32.totalorder %s20, 1
      %s208 = scalar_select %p207, %s20, 1
      %s209 = smul.addr %s208, 52
      %s210 = smul.addr %s209, 4
      %s211 = scalar_lea.vmem %s0, %s210
      %p212 = pneg %p49
      %p213 = pneg %p46
      %p214 = pneg %p70
      %p215 = pneg %p67
      %p216 = pneg %p91
      %p217 = pneg %p88
      %p218 = pneg %p112
      %p219 = pneg %p109
      %p220 = pneg %p133
      %p221 = pneg %p130
      %p222 = pneg %p161
      %p223 = pneg %p158
      %p224 = scmp.lt.s32.totalorder %s20, 1
      %s225 = scalar_select %p224, %s20, 1
      %p226 = scmp.lt.s32.totalorder %s21, 2
      %s227 = scalar_select %p226, %s21, 2
      %s228 = smul.addr %s225, 3
      %s229 = sadd.s32 %s227, %s228
      %s230 = smul.addr %s229, 8
      %s231 = scalar_lea.vmem %s5, %s230
      %p232 = scmp.lt.s32.totalorder %s20, 1
      %s233 = scalar_select %p232, %s20, 1
      %s234 = smul.addr %s233, 52
      %s235 = smul.addr %s234, 4
      %s236 = scalar_lea.vmem %s0, %s235
      %p237 = scmp.lt.s32.totalorder %s20, 1
      %s238 = scalar_select %p237, %s20, 1
      %p239 = scmp.lt.s32.totalorder %s21, 2
      %s240 = scalar_select %p239, %s21, 2
      %s241 = smul.addr %s238, 3
      %s242 = sadd.s32 %s240, %s241
      %s243 = smul.addr %s242, 8
      %s244 = scalar_lea.vmem %s5, %s243
      %s246 = smul.u32 %s21, 128
      %s247 = sshra.s32 %s246, 7
      %s248 = sand.u32 %s246, 127
      %s249 = smul.addr %s247, 4
      %s250 = scalar_lea.vmem %s236, %s249
      %v251 = vld [vmem:[%s250] sm:$0xff]
      %v252 = vld [vmem:[%s250 + $0x10] sm:$0xff]
      %v253 = vld [vmem:[%s250 + $0x20] sm:$0xff]
      %v254 = vld [vmem:[%s250 + $0x30] sm:$0xff]
      %v255 = vld [vmem:[%s250 + $0x40] sm:$0xff]
      %v256 = vld [vmem:[%s250 + $0x50] sm:$0xff]
      %v257 = vld [vmem:[%s250 + $0x60] sm:$0xff]
      %v258 = vld [vmem:[%s250 + $0x70] sm:$0xff]
      %v259 = vld [vmem:[%s250 + $0x80] sm:$0xff]
      %v260 = vld [vmem:[%s250 + $0x90] sm:$0xff]
      %v261 = vld [vmem:[%s250 + $0xa0] sm:$0xff]
      %v262 = vld [vmem:[%s250 + $0xb0] sm:$0xff]
      %v263 = vld [vmem:[%s250 + $0xc0] sm:$0x33]
      %v264 = vld [vmem:[%s1] sm:$0xf]
      %v265 = vld [vmem:[%s1 + $0x4] sm:$0xf]
      %v266 = vld [vmem:[%s1 + $0x8] sm:$0xf]
      %v267 = vld [vmem:[%s1 + $0xc] sm:$0xf]
      %v268 = vld [vmem:[%s1 + $0x10] sm:$0xf]
      %v269 = vld [vmem:[%s1 + $0x14] sm:$0xf]
      %v270 = vld [vmem:[%s1 + $0x18] sm:$0xf]
      %v271 = vld [vmem:[%s1 + $0x1c] sm:$0xf]
      %v272 = vld [vmem:[%s1 + $0x20] sm:$0xf]
      %v273 = vld [vmem:[%s1 + $0x24] sm:$0xf]
      %v274 = vld [vmem:[%s1 + $0x28] sm:$0xf]
      %v275 = vld [vmem:[%s1 + $0x2c] sm:$0xf]
      %s276 = scalar_lea.vmem %s1, 48
      %v277 = vld [vmem:[%s276] sm:$0xf]
      %v278 = vld [vmem:[%s276 + $0x4] sm:$0xf]
      %v279 = vld [vmem:[%s276 + $0x8] sm:$0xf]
      %v280 = vld [vmem:[%s276 + $0xc] sm:$0xf]
      %v281 = vld [vmem:[%s276 + $0x10] sm:$0xf]
      %v282 = vld [vmem:[%s276 + $0x14] sm:$0xf]
      %v283 = vld [vmem:[%s276 + $0x18] sm:$0xf]
      %v284 = vld [vmem:[%s276 + $0x1c] sm:$0xf]
      %v285 = vld [vmem:[%s276 + $0x20] sm:$0xf]
      %v286 = vld [vmem:[%s276 + $0x24] sm:$0xf]
      %v287 = vld [vmem:[%s276 + $0x28] sm:$0xf]
      %v288 = vld [vmem:[%s276 + $0x2c] sm:$0xf]
      %v301 = vunpack.c.l.b16 %v277
      %v302 = vunpack.c.l.b16 %v278
      %v303 = vunpack.c.l.b16 %v279
      %v304 = vunpack.c.l.b16 %v280
      %v305 = vunpack.c.l.b16 %v281
      %v306 = vunpack.c.l.b16 %v282
      %v307 = vunpack.c.l.b16 %v283
      %v308 = vunpack.c.l.b16 %v284
      %v309 = vunpack.c.l.b16 %v285
      %v310 = vunpack.c.l.b16 %v286
      %v311 = vunpack.c.l.b16 %v287
      %v312 = vunpack.c.l.b16 %v288
      %v313 = vpack.c.b16 %v302, %v301
      %v314 = vpack.c.b16 %v304, %v303
      %v315 = vpack.c.b16 %v306, %v305
      %v316 = vpack.c.b16 %v308, %v307
      %v317 = vpack.c.b16 %v310, %v309
      %v318 = vpack.c.b16 %v312, %v311
      %v332 = vunpack.c.l.b16 %v251
      %v333 = vunpack.c.h.b16 %v251
      %v334 = vunpack.c.l.b16 %v252
      %v335 = vunpack.c.h.b16 %v252
      %v336 = vunpack.c.l.b16 %v253
      %v337 = vunpack.c.h.b16 %v253
      %v338 = vunpack.c.l.b16 %v254
      %v339 = vunpack.c.h.b16 %v254
      %v340 = vunpack.c.l.b16 %v255
      %v341 = vunpack.c.h.b16 %v255
      %v342 = vunpack.c.l.b16 %v256
      %v343 = vunpack.c.h.b16 %v256
      %v344 = vunpack.c.l.b16 %v257
      %v345 = vunpack.c.h.b16 %v257
      %v346 = vunpack.c.l.b16 %v258
      %v347 = vunpack.c.h.b16 %v258
      %v348 = vunpack.c.l.b16 %v259
      %v349 = vunpack.c.h.b16 %v259
      %v350 = vunpack.c.l.b16 %v260
      %v351 = vunpack.c.h.b16 %v260
      %v352 = vunpack.c.l.b16 %v261
      %v353 = vunpack.c.h.b16 %v261
      %v354 = vunpack.c.l.b16 %v262
      %v355 = vunpack.c.h.b16 %v262
      %v356 = vunpack.c.l.b16 %v263
      %v357 = vunpack.c.h.b16 %v263
      %v358 = vpack.c.b16 %v334, %v332
      %v359 = vpack.c.b16 %v335, %v333
      %v360 = vpack.c.b16 %v338, %v336
      %v361 = vpack.c.b16 %v339, %v337
      %v362 = vpack.c.b16 %v342, %v340
      %v363 = vpack.c.b16 %v343, %v341
      %v364 = vpack.c.b16 %v346, %v344
      %v365 = vpack.c.b16 %v347, %v345
      %v366 = vpack.c.b16 %v350, %v348
      %v367 = vpack.c.b16 %v351, %v349
      %v368 = vpack.c.b16 %v354, %v352
      %v369 = vpack.c.b16 %v355, %v353
      %v370 = vpack.c.b16 %v356, %v356
      %v371 = vpack.c.b16 %v357, %v357
      %372 = vrot.lane.b32.xlu0 %v358, 127
      %v373 = vpop.permute.xlu0 %372
      %374 = vrot.lane.b32.xlu0 %v359, 127
      %v375 = vpop.permute.xlu0 %374
      %376 = vrot.lane.b32.xlu0 %v360, 127
      %v377 = vpop.permute.xlu0 %376
      %378 = vrot.lane.b32.xlu0 %v361, 127
      %v379 = vpop.permute.xlu0 %378
      %380 = vrot.lane.b32.xlu0 %v362, 127
      %v381 = vpop.permute.xlu0 %380
      %382 = vrot.lane.b32.xlu0 %v363, 127
      %v383 = vpop.permute.xlu0 %382
      %384 = vrot.lane.b32.xlu0 %v364, 127
      %v385 = vpop.permute.xlu0 %384
      %386 = vrot.lane.b32.xlu0 %v365, 127
      %v387 = vpop.permute.xlu0 %386
      %388 = vrot.lane.b32.xlu0 %v366, 127
      %v389 = vpop.permute.xlu0 %388
      %390 = vrot.lane.b32.xlu0 %v367, 127
      %v391 = vpop.permute.xlu0 %390
      %392 = vrot.lane.b32.xlu0 %v368, 127
      %v393 = vpop.permute.xlu0 %392
      %394 = vrot.lane.b32.xlu0 %v369, 127
      %v395 = vpop.permute.xlu0 %394
      %396 = vrot.lane.b32.xlu0 %v370, 127
      %v397 = vpop.permute.xlu0 %396
      %398 = vrot.lane.b32.xlu0 %v371, 127
      %v399 = vpop.permute.xlu0 %398
      %vm400 = vcmask 1039360
      %v401 = vsel %vm400, %v373, %v375
      %v402 = vsel %vm400, %v377, %v379
      %v403 = vsel %vm400, %v381, %v383
      %v404 = vsel %vm400, %v385, %v387
      %v405 = vsel %vm400, %v389, %v391
      %v406 = vsel %vm400, %v393, %v395
      %v407 = vsel %vm400, %v397, %v399
      %vm414 = vcmask 809984
      %v416 = vsel %vm414, %v313, 0
      %v419 = vsel %vm414, %v314, 0
      %v422 = vsel %vm414, %v315, 0
      %v425 = vsel %vm414, %v316, 0
      %v428 = vsel %vm414, %v317, 0
      %v431 = vsel %vm414, %v318, 0
      %vm433 = vcmask 1040384
      %vm434 = vcmask 1041408
      %v435 = vsel %vm433, 4294967295, 65535
      %v436 = vsel %vm434, %v435, 0
      %v438 = vand.u32 %v407, %v436
      %440 = vmatprep.subr.bf16.mxu0 0
      %441 = vmatpush1.bf16.msra.mxu0 %v401
      %442 = vmatprep.subr.bf16.mxu0 0
      %443 = vmatpush1.bf16.msra.mxu0 %v402
      %444 = vmatprep.subr.bf16.mxu0 0
      %445 = vmatpush1.bf16.msra.mxu0 %v403
      %446 = vmatprep.subr.bf16.mxu0 0
      %447 = vmatpush1.bf16.msra.mxu0 %v404
      %448 = vmatprep.subr.bf16.mxu0 0
      %449 = vmatpush1.bf16.msra.mxu0 %v405
      %450 = vmatprep.subr.bf16.mxu0 0
      %451 = vmatpush1.bf16.msra.mxu0 %v406
      %452 = vmatprep.subr.bf16.mxu0 0
      %453 = vmatpush1.bf16.msra.mxu0 %v438
      %454 = vmatprep.subr.bf16.mxu0 0
      %455 = vmatpush1.bf16.msra.mxu0 0
      %456 = vmatprep.subr.bf16.mxu0 0
      %457 = vmatpush1.bf16.msra.mxu0 0
      %458 = vmatprep.subr.bf16.mxu0 0
      %459 = vmatpush1.bf16.msra.mxu0 0
      %460 = vmatprep.subr.bf16.mxu0 0
      %461 = vmatpush1.bf16.msra.mxu0 0
      %462 = vmatprep.subr.bf16.mxu0 0
      %463 = vmatpush1.bf16.msra.mxu0 0
      %464 = vmatprep.subr.bf16.mxu0 0
      %465 = vmatpush1.bf16.msra.mxu0 0
      %466 = vmatprep.subr.bf16.mxu0 0
      %467 = vmatpush1.bf16.msra.mxu0 0
      %468 = vmatprep.subr.bf16.mxu0 0
      %469 = vmatpush1.bf16.msra.mxu0 0
      %470 = vmatprep.subr.bf16.mxu0 0
      %471 = vmatpush1.bf16.msra.mxu0 0
      %472 = vmatprep.mubr.bf16.mxu0 0
      %473 = vmatmul.mubr.bf16.gmra.mrb[0].mxu0 %v416
      %v474 = vpop.f32.mrb[0].mxu0
      %v475 = vadd.f32 0.0, %v474
      %v476 = vpop.f32.mrb[0].mxu0
      %v477 = vpop.f32.mrb[0].mxu0
      %v478 = vadd.f32 0.0, %v477
      %v479 = vpop.f32.mrb[0].mxu0
      %480 = vmatprep.mubr.bf16.mxu0 0
      %481 = vmatmul.mubr.bf16.gmra.mrb[0].mxu0 %v419
      %v482 = vpop.f32.mrb[0].mxu0
      %v483 = vadd.f32 0.0, %v482
      %v484 = vpop.f32.mrb[0].mxu0
      %v485 = vpop.f32.mrb[0].mxu0
      %v486 = vadd.f32 0.0, %v485
      %v487 = vpop.f32.mrb[0].mxu0
      %488 = vmatprep.mubr.bf16.mxu0 0
      %489 = vmatmul.mubr.bf16.gmra.mrb[0].mxu0 %v422
      %v490 = vpop.f32.mrb[0].mxu0
      %v491 = vadd.f32 0.0, %v490
      %v492 = vpop.f32.mrb[0].mxu0
      %v493 = vpop.f32.mrb[0].mxu0
      %v494 = vadd.f32 0.0, %v493
      %v495 = vpop.f32.mrb[0].mxu0
      %496 = vmatprep.mubr.bf16.mxu0 0
      %497 = vmatmul.mubr.bf16.gmra.mrb[0].mxu0 %v425
      %v498 = vpop.f32.mrb[0].mxu0
      %v499 = vadd.f32 0.0, %v498
      %v500 = vpop.f32.mrb[0].mxu0
      %v501 = vpop.f32.mrb[0].mxu0
      %v502 = vadd.f32 0.0, %v501
      %v503 = vpop.f32.mrb[0].mxu0
      %504 = vmatprep.mubr.bf16.mxu0 0
      %505 = vmatmul.mubr.bf16.gmra.mrb[0].mxu0 %v428
      %v506 = vpop.f32.mrb[0].mxu0
      %v507 = vadd.f32 0.0, %v506
      %v508 = vpop.f32.mrb[0].mxu0
      %v509 = vpop.f32.mrb[0].mxu0
      %v510 = vadd.f32 0.0, %v509
      %v511 = vpop.f32.mrb[0].mxu0
      %512 = vmatprep.mubr.bf16.mxu0 0
      %513 = vmatmul.mubr.bf16.gmra.mrb[0].mxu0 %v431
      %v514 = vpop.f32.mrb[0].mxu0
      %v515 = vadd.f32 0.0, %v514
      %v516 = vpop.f32.mrb[0].mxu0
      %v517 = vpop.f32.mrb[0].mxu0
      %v518 = vadd.f32 0.0, %v517
      %v519 = vpop.f32.mrb[0].mxu0
      %520 = vdwg.mxu0
      %v533 = vunpack.c.l.b16 %v264
      %v534 = vunpack.c.l.b16 %v265
      %v535 = vunpack.c.l.b16 %v266
      %v536 = vunpack.c.l.b16 %v267
      %v537 = vunpack.c.l.b16 %v268
      %v538 = vunpack.c.l.b16 %v269
      %v539 = vunpack.c.l.b16 %v270
      %v540 = vunpack.c.l.b16 %v271
      %v541 = vunpack.c.l.b16 %v272
      %v542 = vunpack.c.l.b16 %v273
      %v543 = vunpack.c.l.b16 %v274
      %v544 = vunpack.c.l.b16 %v275
      %v545 = vpack.c.b16 %v534, %v533
      %v546 = vpack.c.b16 %v536, %v535
      %v547 = vpack.c.b16 %v538, %v537
      %v548 = vpack.c.b16 %v540, %v539
      %v549 = vpack.c.b16 %v542, %v541
      %v550 = vpack.c.b16 %v544, %v543
      %v558 = vsel %vm414, %v545, 0
      %v561 = vsel %vm414, %v546, 0
      %v564 = vsel %vm414, %v547, 0
      %v567 = vsel %vm414, %v548, 0
      %v570 = vsel %vm414, %v549, 0
      %v573 = vsel %vm414, %v550, 0
      %v576 = vand.u32 %v370, %v436
      %578 = vmatprep.subr.bf16.mxu0 0
      %579 = vmatpush1.bf16.msra.mxu0 %v358
      %580 = vmatprep.subr.bf16.mxu0 0
      %581 = vmatpush1.bf16.msra.mxu0 %v360
      %582 = vmatprep.subr.bf16.mxu0 0
      %583 = vmatpush1.bf16.msra.mxu0 %v362
      %584 = vmatprep.subr.bf16.mxu0 0
      %585 = vmatpush1.bf16.msra.mxu0 %v364
      %586 = vmatprep.subr.bf16.mxu0 0
      %587 = vmatpush1.bf16.msra.mxu0 %v366
      %588 = vmatprep.subr.bf16.mxu0 0
      %589 = vmatpush1.bf16.msra.mxu0 %v368
      %590 = vmatprep.subr.bf16.mxu0 0
      %591 = vmatpush1.bf16.msra.mxu0 %v576
      %592 = vmatprep.subr.bf16.mxu0 0
      %593 = vmatpush1.bf16.msra.mxu0 0
      %594 = vmatprep.subr.bf16.mxu0 0
      %595 = vmatpush1.bf16.msra.mxu0 0
      %596 = vmatprep.subr.bf16.mxu0 0
      %597 = vmatpush1.bf16.msra.mxu0 0
      %598 = vmatprep.subr.bf16.mxu0 0
      %599 = vmatpush1.bf16.msra.mxu0 0
      %600 = vmatprep.subr.bf16.mxu0 0
      %601 = vmatpush1.bf16.msra.mxu0 0
      %602 = vmatprep.subr.bf16.mxu0 0
      %603 = vmatpush1.bf16.msra.mxu0 0
      %604 = vmatprep.subr.bf16.mxu0 0
      %605 = vmatpush1.bf16.msra.mxu0 0
      %606 = vmatprep.subr.bf16.mxu0 0
      %607 = vmatpush1.bf16.msra.mxu0 0
      %608 = vmatprep.subr.bf16.mxu0 0
      %609 = vmatpush1.bf16.msra.mxu0 0
      %610 = vmatprep.mubr.bf16.mxu0 0
      %611 = vmatmul.mubr.bf16.gmra.mrb[0].mxu0 %v558
      %v612 = vpop.f32.mrb[0].mxu0
      %v613 = vadd.f32 %v475, %v612
      %v614 = vpop.f32.mrb[0].mxu0
      %v615 = vpop.f32.mrb[0].mxu0
      %v616 = vadd.f32 %v478, %v615
      %v617 = vpop.f32.mrb[0].mxu0
      %618 = vmatprep.mubr.bf16.mxu0 0
      %619 = vmatmul.mubr.bf16.gmra.mrb[0].mxu0 %v561
      %v620 = vpop.f32.mrb[0].mxu0
      %v621 = vadd.f32 %v483, %v620
      %v622 = vpop.f32.mrb[0].mxu0
      %v623 = vpop.f32.mrb[0].mxu0
      %v624 = vadd.f32 %v486, %v623
      %v625 = vpop.f32.mrb[0].mxu0
      %626 = vmatprep.mubr.bf16.mxu0 0
      %627 = vmatmul.mubr.bf16.gmra.mrb[0].mxu0 %v564
      %v628 = vpop.f32.mrb[0].mxu0
      %v629 = vadd.f32 %v491, %v628
      %v630 = vpop.f32.mrb[0].mxu0
      %v631 = vpop.f32.mrb[0].mxu0
      %v632 = vadd.f32 %v494, %v631
      %v633 = vpop.f32.mrb[0].mxu0
      %634 = vmatprep.mubr.bf16.mxu0 0
      %635 = vmatmul.mubr.bf16.gmra.mrb[0].mxu0 %v567
      %v636 = vpop.f32.mrb[0].mxu0
      %v637 = vadd.f32 %v499, %v636
      %v638 = vpop.f32.mrb[0].mxu0
      %v639 = vpop.f32.mrb[0].mxu0
      %v640 = vadd.f32 %v502, %v639
      %v641 = vpop.f32.mrb[0].mxu0
      %642 = vmatprep.mubr.bf16.mxu0 0
      %643 = vmatmul.mubr.bf16.gmra.mrb[0].mxu0 %v570
      %v644 = vpop.f32.mrb[0].mxu0
      %v645 = vadd.f32 %v507, %v644
      %v646 = vpop.f32.mrb[0].mxu0
      %v647 = vpop.f32.mrb[0].mxu0
      %v648 = vadd.f32 %v510, %v647
      %v649 = vpop.f32.mrb[0].mxu0
      %650 = vmatprep.mubr.bf16.mxu0 0
      %651 = vmatmul.mubr.bf16.gmra.mrb[0].mxu0 %v573
      %v652 = vpop.f32.mrb[0].mxu0
      %v653 = vadd.f32 %v515, %v652
      %v654 = vpop.f32.mrb[0].mxu0
      %v655 = vpop.f32.mrb[0].mxu0
      %v656 = vadd.f32 %v518, %v655
      %v657 = vpop.f32.mrb[0].mxu0
      %658 = vdwg.mxu0
      %s659 = scalar_lea.vmem %s1, 96
      %v660 = vld [vmem:[%s659] sm:$0xf]
      %v661 = vld [vmem:[%s659 + $0x4] sm:$0xf]
      %v662 = vld [vmem:[%s659 + $0x8] sm:$0xf]
      %v663 = vld [vmem:[%s659 + $0xc] sm:$0xf]
      %v664 = vld [vmem:[%s659 + $0x10] sm:$0xf]
      %v665 = vld [vmem:[%s659 + $0x14] sm:$0xf]
      %v666 = vld [vmem:[%s659 + $0x18] sm:$0xf]
      %v667 = vld [vmem:[%s659 + $0x1c] sm:$0xf]
      %v668 = vld [vmem:[%s659 + $0x20] sm:$0xf]
      %v669 = vld [vmem:[%s659 + $0x24] sm:$0xf]
      %v670 = vld [vmem:[%s659 + $0x28] sm:$0xf]
      %v671 = vld [vmem:[%s659 + $0x2c] sm:$0xf]
      %v684 = vunpack.c.l.b16 %v660
      %v685 = vunpack.c.l.b16 %v661
      %v686 = vunpack.c.l.b16 %v662
      %v687 = vunpack.c.l.b16 %v663
      %v688 = vunpack.c.l.b16 %v664
      %v689 = vunpack.c.l.b16 %v665
      %v690 = vunpack.c.l.b16 %v666
      %v691 = vunpack.c.l.b16 %v667
      %v692 = vunpack.c.l.b16 %v668
      %v693 = vunpack.c.l.b16 %v669
      %v694 = vunpack.c.l.b16 %v670
      %v695 = vunpack.c.l.b16 %v671
      %v696 = vpack.c.b16 %v685, %v684
      %v697 = vpack.c.b16 %v687, %v686
      %v698 = vpack.c.b16 %v689, %v688
      %v699 = vpack.c.b16 %v691, %v690
      %v700 = vpack.c.b16 %v693, %v692
      %v701 = vpack.c.b16 %v695, %v694
      %702 = vrot.lane.b32.xlu0 %v358, 126
      %v703 = vpop.permute.xlu0 %702
      %704 = vrot.lane.b32.xlu0 %v359, 126
      %v705 = vpop.permute.xlu0 %704
      %706 = vrot.lane.b32.xlu0 %v360, 126
      %v707 = vpop.permute.xlu0 %706
      %708 = vrot.lane.b32.xlu0 %v361, 126
      %v709 = vpop.permute.xlu0 %708
      %710 = vrot.lane.b32.xlu0 %v362, 126
      %v711 = vpop.permute.xlu0 %710
      %712 = vrot.lane.b32.xlu0 %v363, 126
      %v713 = vpop.permute.xlu0 %712
      %714 = vrot.lane.b32.xlu0 %v364, 126
      %v715 = vpop.permute.xlu0 %714
      %716 = vrot.lane.b32.xlu0 %v365, 126
      %v717 = vpop.permute.xlu0 %716
      %718 = vrot.lane.b32.xlu0 %v366, 126
      %v719 = vpop.permute.xlu0 %718
      %720 = vrot.lane.b32.xlu0 %v367, 126
      %v721 = vpop.permute.xlu0 %720
      %722 = vrot.lane.b32.xlu0 %v368, 126
      %v723 = vpop.permute.xlu0 %722
      %724 = vrot.lane.b32.xlu0 %v369, 126
      %v725 = vpop.permute.xlu0 %724
      %726 = vrot.lane.b32.xlu0 %v370, 126
      %v727 = vpop.permute.xlu0 %726
      %728 = vrot.lane.b32.xlu0 %v371, 126
      %v729 = vpop.permute.xlu0 %728
      %vm730 = vcmask 1031168
      %v731 = vsel %vm730, %v703, %v705
      %v732 = vsel %vm730, %v707, %v709
      %v733 = vsel %vm730, %v711, %v713
      %v734 = vsel %vm730, %v715, %v717
      %v735 = vsel %vm730, %v719, %v721
      %v736 = vsel %vm730, %v723, %v725
      %v737 = vsel %vm730, %v727, %v729
      %v745 = vsel %vm414, %v696, 0
      %v748 = vsel %vm414, %v697, 0
      %v751 = vsel %vm414, %v698, 0
      %v754 = vsel %vm414, %v699, 0
      %v757 = vsel %vm414, %v700, 0
      %v760 = vsel %vm414, %v701, 0
      %v763 = vand.u32 %v737, %v436
      %765 = vmatprep.subr.bf16.mxu0 0
      %766 = vmatpush1.bf16.msra.mxu0 %v731
      %767 = vmatprep.subr.bf16.mxu0 0
      %768 = vmatpush1.bf16.msra.mxu0 %v732
      %769 = vmatprep.subr.bf16.mxu0 0
      %770 = vmatpush1.bf16.msra.mxu0 %v733
      %771 = vmatprep.subr.bf16.mxu0 0
      %772 = vmatpush1.bf16.msra.mxu0 %v734
      %773 = vmatprep.subr.bf16.mxu0 0
      %774 = vmatpush1.bf16.msra.mxu0 %v735
      %775 = vmatprep.subr.bf16.mxu0 0
      %776 = vmatpush1.bf16.msra.mxu0 %v736
      %777 = vmatprep.subr.bf16.mxu0 0
      %778 = vmatpush1.bf16.msra.mxu0 %v763
      %779 = vmatprep.subr.bf16.mxu0 0
      %780 = vmatpush1.bf16.msra.mxu0 0
      %781 = vmatprep.subr.bf16.mxu0 0
      %782 = vmatpush1.bf16.msra.mxu0 0
      %783 = vmatprep.subr.bf16.mxu0 0
      %784 = vmatpush1.bf16.msra.mxu0 0
      %785 = vmatprep.subr.bf16.mxu0 0
      %786 = vmatpush1.bf16.msra.mxu0 0
      %787 = vmatprep.subr.bf16.mxu0 0
      %788 = vmatpush1.bf16.msra.mxu0 0
      %789 = vmatprep.subr.bf16.mxu0 0
      %790 = vmatpush1.bf16.msra.mxu0 0
      %791 = vmatprep.subr.bf16.mxu0 0
      %792 = vmatpush1.bf16.msra.mxu0 0
      %793 = vmatprep.subr.bf16.mxu0 0
      %794 = vmatpush1.bf16.msra.mxu0 0
      %795 = vmatprep.subr.bf16.mxu0 0
      %796 = vmatpush1.bf16.msra.mxu0 0
      %797 = vmatprep.mubr.bf16.mxu0 0
      %798 = vmatmul.mubr.bf16.gmra.mrb[0].mxu0 %v745
      %v799 = vpop.f32.mrb[0].mxu0
      %v800 = vadd.f32 0.0, %v799
      %v801 = vpop.f32.mrb[0].mxu0
      %v802 = vpop.f32.mrb[0].mxu0
      %v803 = vadd.f32 0.0, %v802
      %v804 = vpop.f32.mrb[0].mxu0
      %805 = vmatprep.mubr.bf16.mxu0 0
      %806 = vmatmul.mubr.bf16.gmra.mrb[0].mxu0 %v748
      %v807 = vpop.f32.mrb[0].mxu0
      %v808 = vadd.f32 0.0, %v807
      %v809 = vpop.f32.mrb[0].mxu0
      %v810 = vpop.f32.mrb[0].mxu0
      %v811 = vadd.f32 0.0, %v810
      %v812 = vpop.f32.mrb[0].mxu0
      %813 = vmatprep.mubr.bf16.mxu0 0
      %814 = vmatmul.mubr.bf16.gmra.mrb[0].mxu0 %v751
      %v815 = vpop.f32.mrb[0].mxu0
      %v816 = vadd.f32 0.0, %v815
      %v817 = vpop.f32.mrb[0].mxu0
      %v818 = vpop.f32.mrb[0].mxu0
      %v819 = vadd.f32 0.0, %v818
      %v820 = vpop.f32.mrb[0].mxu0
      %821 = vmatprep.mubr.bf16.mxu0 0
      %822 = vmatmul.mubr.bf16.gmra.mrb[0].mxu0 %v754
      %v823 = vpop.f32.mrb[0].mxu0
      %v824 = vadd.f32 0.0, %v823
      %v825 = vpop.f32.mrb[0].mxu0
      %v826 = vpop.f32.mrb[0].mxu0
      %v827 = vadd.f32 0.0, %v826
      %v828 = vpop.f32.mrb[0].mxu0
      %829 = vmatprep.mubr.bf16.mxu0 0
      %830 = vmatmul.mubr.bf16.gmra.mrb[0].mxu0 %v757
      %v831 = vpop.f32.mrb[0].mxu0
      %v832 = vadd.f32 0.0, %v831
      %v833 = vpop.f32.mrb[0].mxu0
      %v834 = vpop.f32.mrb[0].mxu0
      %v835 = vadd.f32 0.0, %v834
      %v836 = vpop.f32.mrb[0].mxu0
      %837 = vmatprep.mubr.bf16.mxu0 0
      %838 = vmatmul.mubr.bf16.gmra.mrb[0].mxu0 %v760
      %v839 = vpop.f32.mrb[0].mxu0
      %v840 = vadd.f32 0.0, %v839
      %v841 = vpop.f32.mrb[0].mxu0
      %v842 = vpop.f32.mrb[0].mxu0
      %v843 = vadd.f32 0.0, %v842
      %v844 = vpop.f32.mrb[0].mxu0
      %845 = vdwg.mxu0
      %v846 = vadd.f32 %v613, %v800
      %v847 = vadd.f32 %v616, %v803
      %v848 = vadd.f32 %v621, %v808
      %v849 = vadd.f32 %v624, %v811
      %v850 = vadd.f32 %v629, %v816
      %v851 = vadd.f32 %v632, %v819
      %v852 = vadd.f32 %v637, %v824
      %v853 = vadd.f32 %v640, %v827
      %v854 = vadd.f32 %v645, %v832
      %v855 = vadd.f32 %v648, %v835
      %v856 = vadd.f32 %v653, %v840
      %v857 = vadd.f32 %v656, %v843
      %v858 = vld [vmem:[%s2] sm:$0xff]
      %v859 = vld [vmem:[%s2 + $0x8] sm:$0xff]
      %v860 = vld [vmem:[%s2 + $0x10] sm:$0xff]
      %v861 = vld [vmem:[%s2 + $0x18] sm:$0xff]
      %v862 = vld [vmem:[%s2 + $0x20] sm:$0xff]
      %v863 = vld [vmem:[%s2 + $0x28] sm:$0xff]
      %v864 = vld [vmem:[%s2 + $0x30] sm:$0xff]
      %v865 = vld [vmem:[%s2 + $0x38] sm:$0xff]
      %v866 = vld [vmem:[%s2 + $0x40] sm:$0xff]
      %v867 = vld [vmem:[%s2 + $0x48] sm:$0xff]
      %v868 = vld [vmem:[%s2 + $0x50] sm:$0xff]
      %v869 = vld [vmem:[%s2 + $0x58] sm:$0xff]
      %871 = vset.pattern.permute.xlu0 0
      %872 = vperm.xlu0 %871, %v858
      %v873 = vpop.permute.xlu0 %872
      %876 = vset.pattern.permute.xlu0 0
      %877 = vperm.xlu0 %876, %v859
      %v878 = vpop.permute.xlu0 %877
      %881 = vset.pattern.permute.xlu0 0
      %882 = vperm.xlu0 %881, %v860
      %v883 = vpop.permute.xlu0 %882
      %886 = vset.pattern.permute.xlu0 0
      %887 = vperm.xlu0 %886, %v861
      %v888 = vpop.permute.xlu0 %887
      %891 = vset.pattern.permute.xlu0 0
      %892 = vperm.xlu0 %891, %v862
      %v893 = vpop.permute.xlu0 %892
      %896 = vset.pattern.permute.xlu0 0
      %897 = vperm.xlu0 %896, %v863
      %v898 = vpop.permute.xlu0 %897
      %901 = vset.pattern.permute.xlu0 0
      %902 = vperm.xlu0 %901, %v864
      %v903 = vpop.permute.xlu0 %902
      %906 = vset.pattern.permute.xlu0 0
      %907 = vperm.xlu0 %906, %v865
      %v908 = vpop.permute.xlu0 %907
      %911 = vset.pattern.permute.xlu0 0
      %912 = vperm.xlu0 %911, %v866
      %v913 = vpop.permute.xlu0 %912
      %916 = vset.pattern.permute.xlu0 0
      %917 = vperm.xlu0 %916, %v867
      %v918 = vpop.permute.xlu0 %917
      %921 = vset.pattern.permute.xlu0 0
      %922 = vperm.xlu0 %921, %v868
      %v923 = vpop.permute.xlu0 %922
      %926 = vset.pattern.permute.xlu0 0
      %927 = vperm.xlu0 %926, %v869
      %v928 = vpop.permute.xlu0 %927
      %v930 = vadd.f32 %v846, %v873
      %v931 = vadd.f32 %v847, %v878
      %v932 = vadd.f32 %v848, %v883
      %v933 = vadd.f32 %v849, %v888
      %v934 = vadd.f32 %v850, %v893
      %v935 = vadd.f32 %v851, %v898
      %v936 = vadd.f32 %v852, %v903
      %v937 = vadd.f32 %v853, %v908
      %v938 = vadd.f32 %v854, %v913
      %v939 = vadd.f32 %v855, %v918
      %v940 = vadd.f32 %v856, %v923
      %v941 = vadd.f32 %v857, %v928
      %v942 = vmax.f32 %v930, 0.0
      %v943 = vmax.f32 %v931, 0.0
      %v944 = vmax.f32 %v932, 0.0
      %v945 = vmax.f32 %v933, 0.0
      %v946 = vmax.f32 %v934, 0.0
      %v947 = vmax.f32 %v935, 0.0
      %v948 = vmax.f32 %v936, 0.0
      %v949 = vmax.f32 %v937, 0.0
      %v950 = vmax.f32 %v938, 0.0
      %v951 = vmax.f32 %v939, 0.0
      %v952 = vmax.f32 %v940, 0.0
      %v953 = vmax.f32 %v941, 0.0
      %v954 = vld [vmem:[%s3] sm:$0xf]
      %v955 = vpack.c.bf16 %v943, %v942
      %v956 = vpack.c.bf16 %v945, %v944
      %v957 = vpack.c.bf16 %v947, %v946
      %v958 = vpack.c.bf16 %v949, %v948
      %v959 = vpack.c.bf16 %v951, %v950
      %v960 = vpack.c.bf16 %v953, %v952
      %v961 = vld [vmem:[%s4] sm:$0xff]
      %963 = vset.pattern.permute.xlu0 0
      %964 = vperm.xlu0 %963, %v961
      %v965 = vpop.permute.xlu0 %964
      %vm967 = vcmask 785408
      %v969 = vsel %vm967, %v954, 0
      %971 = vmatprep.subr.bf16.mxu0 0
      %972 = vmatpush1.bf16.msra.mxu0 %v955
      %973 = vmatprep.subr.bf16.mxu0 0
      %974 = vmatpush1.bf16.msra.mxu0 %v956
      %975 = vmatprep.subr.bf16.mxu0 0
      %976 = vmatpush1.bf16.msra.mxu0 %v957
      %977 = vmatprep.subr.bf16.mxu0 0
      %978 = vmatpush1.bf16.msra.mxu0 %v958
      %979 = vmatprep.subr.bf16.mxu0 0
      %980 = vmatpush1.bf16.msra.mxu0 %v959
      %981 = vmatprep.subr.bf16.mxu0 0
      %982 = vmatpush1.bf16.msra.mxu0 %v960
      %983 = vmatprep.subr.bf16.mxu0 0
      %984 = vmatpush1.bf16.msra.mxu0 0
      %985 = vmatprep.subr.bf16.mxu0 0
      %986 = vmatpush1.bf16.msra.mxu0 0
      %987 = vmatprep.subr.bf16.mxu0 0
      %988 = vmatpush1.bf16.msra.mxu0 0
      %989 = vmatprep.subr.bf16.mxu0 0
      %990 = vmatpush1.bf16.msra.mxu0 0
      %991 = vmatprep.subr.bf16.mxu0 0
      %992 = vmatpush1.bf16.msra.mxu0 0
      %993 = vmatprep.subr.bf16.mxu0 0
      %994 = vmatpush1.bf16.msra.mxu0 0
      %995 = vmatprep.subr.bf16.mxu0 0
      %996 = vmatpush1.bf16.msra.mxu0 0
      %997 = vmatprep.subr.bf16.mxu0 0
      %998 = vmatpush1.bf16.msra.mxu0 0
      %999 = vmatprep.subr.bf16.mxu0 0
      %1000 = vmatpush1.bf16.msra.mxu0 0
      %1001 = vmatprep.subr.bf16.mxu0 0
      %1002 = vmatpush1.bf16.msra.mxu0 0
      %1003 = vmatprep.mubr.bf16.mxu0 0
      %1004 = vmatmul.mubr.bf16.gmra.mrb[0].mxu0 %v969
      %v1005 = vpop.f32.mrb[0].mxu0
      %v1006 = vadd.f32 %v965, %v1005
      %v1007 = vpop.f32.mrb[0].mxu0
      %v1008 = vpop.f32.mrb[0].mxu0
      %v1009 = vpop.f32.mrb[0].mxu0
      %1010 = vdwg.mxu0
      %1011 = vst [vmem:[%s244] sm:$0xff] %v1006
      %p1012 = scmp.lt.s32.totalorder %s20, 1
      %s1013 = scalar_select %p1012, %s20, 1
      %p1014 = scmp.lt.s32.totalorder %s21, 2
      %s1015 = scalar_select %p1014, %s21, 2
      %s1016 = smul.addr %s1013, 3
      %s1017 = sadd.s32 %s1015, %s1016
      %s1018 = smul.addr %s1017, 8
      %s1019 = scalar_lea.vmem %s5, %s1018
      // Predicated region
      $region41: #{_pc_stack_forward.1} parent=39 // pred_check
        %p1020 = pneg %p158
      $region42: #{_pc_stack_forward.1} parent=39 // pred_check_branch
        %1022 = sbr.rel (%p1020) target = $region44
      $region43: #{_pc_stack_forward.1} parent=39 // pred_region
        _
      $region44: #{_pc_stack_forward.1} parent=39 // pred_fallthru
        _
    $region40: #{_pc_stack_forward.1} parent=5 // pred_fallthru
      _
    %p1023 = scmp.le.s32.totalorder 2, %s11
    // Predicated region
    $region45: #{_pc_stack_forward.1} parent=5 // pred_check
      %p1024 = pneg %p1023
    $region46: #{_pc_stack_forward.1} parent=5 // pred_check_branch
      %1026 = sbr.rel (%p1024) target = $region48
    $region47: #{_pc_stack_forward.1} parent=5 // pred_region
      %s1027 = ssub.s32 %s11, 2
      // Predicated region
      $region49: #{_pc_stack_forward.1} parent=47 // pred_check
        %p1028 = pneg %p164
      $region50: #{_pc_stack_forward.1} parent=47 // pred_check_branch
        %1030 = sbr.rel (%p1028) target = $region52
      $region51: #{_pc_stack_forward.1} parent=47 // pred_region
        %p1031 = scmp.lt.s32.totalorder %s22, 1
        %s1032 = scalar_select %p1031, %s22, 1
        %p1033 = scmp.lt.s32.totalorder %s23, 2
        %s1034 = scalar_select %p1033, %s23, 2
        %s1035 = smul.addr %s1032, 3
        %s1036 = sadd.s32 %s1034, %s1035
        %s1037 = smul.addr %s1036, 8
        %s1038 = scalar_lea.vmem %s5, %s1037
      $region52: #{_pc_stack_forward.1} parent=47 // pred_fallthru
        _
    $region48: #{_pc_stack_forward.1} parent=5 // pred_fallthru
      _
  $region6: #{_pc_stack_forward.1} parent=0 // loop_footer
    %s15 = sadd.s32 1, %s11
  $region7: #{_pc_stack_forward.1} parent=0 // loop_footer_branch
    %10 = sbr.rel target = $region3
  $region8: #{_pc_stack_forward.1} parent=0 // loop_exit
    _

</llo_original>
